<compile_context>
chip_gen: v6e
topology: v6e:2x2x1
jax: 0.10.0
libtpu: 0.0.40
codegen_flags: <defaults>
</compile_context>

<pallas_src>
import functools

import jax
import jax.numpy as jnp
from jax.experimental import pallas as pl
from jax.experimental.pallas import tpu as pltpu


def _div_norm_kernel(x_ref, g_ref, k_ref, a_ref, invs_ref,
                     resp_ref, gout_ref, *, epsilon, sqrt):
    # x_ref, g_ref, resp_ref, gout_ref : (tile_rows, tile_lanes)
    # k_ref, a_ref, invs_ref           : (tile_rows, 1)  (broadcast over lanes)
    x = x_ref[...]
    g_prev = g_ref[...]

    k = k_ref[...]             # clamp(K, eps)              (wrapper)
    a = a_ref[...]             # sigmoid(alpha - 0.5)       (wrapper)
    inv_sigma = invs_ref[...]  # 1 / (clamp(sigma, eps)+eps) (wrapper)

    # L = relu(x)
    L = jnp.maximum(x, 0.0)

    # G_prev = clamp(G_prev, 0, K)   (K broadcast over the lane axis)
    g_c = jnp.clip(g_prev, 0.0, k)

    # F = (K - G_prev + eps) / (sigma + eps)   (or sqrt variant)
    num = k - g_c + epsilon
    if sqrt:
        num = jnp.sqrt(num)
    F = num * inv_sigma

    # response = relu(L * F)  (mathematically L*F >= 0; the extra max is free
    # in a memory-bound kernel and keeps exact module semantics)
    resp = jnp.maximum(L * F, 0.0)

    # G = (1 - a) * G_prev + a * response  ==  G_prev + a * (response - G_prev)
    gout = g_c + a * (resp - g_c)

    resp_ref[...] = resp
    gout_ref[...] = gout


def _choose_tiles(R, HW, target_block_bytes):
    """Pick (tile_rows, tile_lanes) giving ~target_block_bytes f32 blocks."""
    # Lane tile: prefer the full (contiguous) spatial extent; only split the
    # lane axis when a single row already exceeds the target and the split
    # can stay 128-aligned (unmasked vst, lane-dense DMA).
    if 4 * HW <= target_block_bytes or HW % 128 != 0:
        tl = HW
    else:
        tl = min(HW, max(128, ((target_block_bytes // 4) // 128) * 128))
    # Row tile: fill the remaining budget, keep it sublane (8) aligned.
    bytes_per_row = 4 * tl
    tr = max(8, target_block_bytes // bytes_per_row)
    tr = (tr // 8) * 8
    if tr >= R:
        tr = R           # full extent (allowed even if R < 8 / unaligned)
    return tr, tl


def divisive_norm_channel(x, g_prev, K, alpha, sigma, *,
                          epsilon=1e-6, sqrt=False,
                          target_block_bytes=1 << 20):
    """Forward pass of DivisiveNormChannel.

    Args:
      x, g_prev: float arrays of shape (B, C, H, W)  (NCHW, like PyTorch).
      K, alpha, sigma: float arrays of shape (C,).
    Returns:
      (response, G) both of shape (B, C, H, W), float32.
    """
    B, C, H, W = x.shape
    R = B * C          # rows  = (batch, channel) pairs
    HW = H * W         # lanes = spatial

    # Free reshapes (no transpose, no copy of the big arrays).
    x2 = x.reshape(R, HW).astype(jnp.float32)
    g2 = g_prev.reshape(R, HW).astype(jnp.float32)

    # Hoist all per-parameter math out of the kernel (tiny (C,) vectors).
    eps = float(epsilon)
    k_c = jnp.maximum(K.astype(jnp.float32), eps)
    a_c = jax.nn.sigmoid(alpha.astype(jnp.float32) - 0.5)   # sigmoid_scaled_shifted, max_val=1
    invs_c = 1.0 / (jnp.maximum(sigma.astype(jnp.float32), eps) + eps)

    # Row-aligned parameter columns (a few KB): row r -> channel r % C.
    k_rows = jnp.tile(k_c, B).reshape(R, 1)
    a_rows = jnp.tile(a_c, B).reshape(R, 1)
    invs_rows = jnp.tile(invs_c, B).reshape(R, 1)

    tile_rows, tile_lanes = _choose_tiles(R, HW, target_block_bytes)
    grid = (pl.cdiv(R, tile_rows), pl.cdiv(HW, tile_lanes))

    kernel = functools.partial(_div_norm_kernel, epsilon=eps, sqrt=bool(sqrt))

    row_spec = pl.BlockSpec((tile_rows, tile_lanes), lambda i, j: (i, j))
    par_spec = pl.BlockSpec((tile_rows, 1), lambda i, j: (i, 0))

    n_elem = R * HW
    cost = pl.CostEstimate(
        flops=8 * n_elem,
        transcendentals=(n_elem if sqrt else 0),
        bytes_accessed=16 * n_elem,   # 2 big inputs + 2 outputs, f32
    )

    resp2, gout2 = pl.pallas_call(
        kernel,
        out_shape=(jax.ShapeDtypeStruct((R, HW), jnp.float32),
                   jax.ShapeDtypeStruct((R, HW), jnp.float32)),
        grid_spec=pltpu.PrefetchScalarGridSpec(
            num_scalar_prefetch=0,
            grid=grid,
            in_specs=[row_spec, row_spec, par_spec, par_spec, par_spec],
            out_specs=[row_spec, row_spec],
        ),
        compiler_params=pltpu.CompilerParams(
            dimension_semantics=("parallel", "parallel")),
        cost_estimate=cost,
    )(x2, g2, k_rows, a_rows, invs_rows)

    # Free reshapes back to NCHW.
    resp = resp2.reshape(B, C, H, W)
    gout = gout2.reshape(B, C, H, W)
    return resp, gout


def _reference(x, g_prev, K, alpha, sigma, epsilon, sqrt):
    """Pure-JAX reference mirroring the PyTorch forward."""
    K = jnp.maximum(K, epsilon)
    sigma = jnp.maximum(sigma, epsilon)
    a = jax.nn.sigmoid(alpha - 0.5)
    bc = lambda t: t[None, :, None, None]
    L = jnp.maximum(x, 0.0)
    g_c = jnp.clip(g_prev, 0.0, bc(K))
    num = bc(K) - g_c + epsilon
    if sqrt:
        num = jnp.sqrt(num)
    F = num / (bc(sigma) + epsilon)
    resp = jnp.maximum(L * F, 0.0)
    gout = (1.0 - bc(a)) * g_c + bc(a) * resp
    return resp, gout


if __name__ == "__main__":
    B, C, H, W = 2, 4, 16, 16
    epsilon = 1e-6
    K_init, alpha_init, sigma_init = 1.0, 0.0, 0.5

    # Deterministic parameter initialization (per module __init__ shapes).
    K = jnp.ones((C,), jnp.float32) * K_init
    alpha = jnp.ones((C,), jnp.float32) * alpha_init
    sigma = jnp.ones((C,), jnp.float32) * sigma_init

    key = jax.random.PRNGKey(0)
    kx, kg = jax.random.split(key)
    x = jax.random.normal(kx, (B, C, H, W), jnp.float32)
    # G_prev in a plausible range (will be clamped to [0, K] anyway).
    g_prev = jax.random.uniform(kg, (B, C, H, W), jnp.float32,
                                minval=-0.5, maxval=1.5)

    resp, gout = divisive_norm_channel(x, g_prev, K, alpha, sigma,
                                       epsilon=epsilon, sqrt=False)
    jax.block_until_ready((resp, gout))

    resp_ref, gout_ref = _reference(x, g_prev, K, alpha, sigma, epsilon, False)
    assert resp.shape == (B, C, H, W) and gout.shape == (B, C, H, W)
    assert jnp.allclose(resp, resp_ref, atol=1e-5, rtol=1e-5)
    assert jnp.allclose(gout, gout_ref, atol=1e-5, rtol=1e-5)

    # Also exercise the sqrt=True branch.
    resp_s, gout_s = divisive_norm_channel(x, g_prev, K, alpha, sigma,
                                           epsilon=epsilon, sqrt=True)
    jax.block_until_ready((resp_s, gout_s))
    resp_sr, gout_sr = _reference(x, g_prev, K, alpha, sigma, epsilon, True)
    assert jnp.allclose(resp_s, resp_sr, atol=1e-5, rtol=1e-5)
    assert jnp.allclose(gout_s, gout_sr, atol=1e-5, rtol=1e-5)

    print("KERNEL_OK")
</pallas_src>

<mosaic_0001>
module attributes {stable_mosaic.version = 11 : i64} {
  func.func @_div_norm_kernel(%arg0: i32, %arg1: i32, %arg2: memref<8x256xf32, #tpu.memory_space<vmem>>, %arg3: memref<8x256xf32, #tpu.memory_space<vmem>>, %arg4: memref<8x1xf32, #tpu.memory_space<vmem>>, %arg5: memref<8x1xf32, #tpu.memory_space<vmem>>, %arg6: memref<8x1xf32, #tpu.memory_space<vmem>>, %arg7: memref<8x256xf32, #tpu.memory_space<vmem>>, %arg8: memref<8x256xf32, #tpu.memory_space<vmem>>) attributes {dimension_semantics = [#tpu.dimension_semantics<parallel>, #tpu.dimension_semantics<parallel>], iteration_bounds = array<i64: 1, 1>, scalar_prefetch = 0 : i64, scratch_operands = 0 : i64, tpu.core_type = #tpu.core_type<tc>, window_params = [{transform_indices = @transform_0, window_bounds = array<i64: 8, 256>}, {transform_indices = @transform_1, window_bounds = array<i64: 8, 256>}, {transform_indices = @transform_2, window_bounds = array<i64: 8, 1>}, {transform_indices = @transform_3, window_bounds = array<i64: 8, 1>}, {transform_indices = @transform_4, window_bounds = array<i64: 8, 1>}, {transform_indices = @transform_5, window_bounds = array<i64: 8, 256>}, {transform_indices = @transform_6, window_bounds = array<i64: 8, 256>}]} {
    %c0 = arith.constant 0 : index
    %c0_0 = arith.constant 0 : index
    %0 = vector.load %arg2[%c0, %c0_0] : memref<8x256xf32, #tpu.memory_space<vmem>>, vector<8x256xf32>
    %c0_1 = arith.constant 0 : index
    %c0_2 = arith.constant 0 : index
    %1 = vector.load %arg3[%c0_1, %c0_2] : memref<8x256xf32, #tpu.memory_space<vmem>>, vector<8x256xf32>
    %c0_3 = arith.constant 0 : index
    %c0_4 = arith.constant 0 : index
    %2 = vector.load %arg4[%c0_3, %c0_4] : memref<8x1xf32, #tpu.memory_space<vmem>>, vector<8x1xf32>
    %c0_5 = arith.constant 0 : index
    %c0_6 = arith.constant 0 : index
    %3 = vector.load %arg5[%c0_5, %c0_6] : memref<8x1xf32, #tpu.memory_space<vmem>>, vector<8x1xf32>
    %c0_7 = arith.constant 0 : index
    %c0_8 = arith.constant 0 : index
    %4 = vector.load %arg6[%c0_7, %c0_8] : memref<8x1xf32, #tpu.memory_space<vmem>>, vector<8x1xf32>
    %cst = arith.constant 0.000000e+00 : f32
    %5 = vector.broadcast %cst : f32 to vector<8x256xf32>
    %6 = arith.maximumf %0, %5 : vector<8x256xf32>
    %cst_9 = arith.constant 0.000000e+00 : f32
    %7 = vector.broadcast %cst_9 : f32 to vector<8x256xf32>
    %8 = arith.maximumf %7, %1 : vector<8x256xf32>
    %9 = vector.broadcast %2 : vector<8x1xf32> to vector<8x256xf32>
    %10 = arith.minimumf %9, %8 : vector<8x256xf32>
    %11 = vector.broadcast %2 : vector<8x1xf32> to vector<8x256xf32>
    %12 = arith.subf %11, %10 : vector<8x256xf32>
    %cst_10 = arith.constant 9.99999997E-7 : f32
    %13 = vector.broadcast %cst_10 : f32 to vector<8x256xf32>
    %14 = arith.addf %12, %13 : vector<8x256xf32>
    %15 = vector.broadcast %4 : vector<8x1xf32> to vector<8x256xf32>
    %16 = arith.mulf %14, %15 : vector<8x256xf32>
    %17 = arith.mulf %6, %16 : vector<8x256xf32>
    %cst_11 = arith.constant 0.000000e+00 : f32
    %18 = vector.broadcast %cst_11 : f32 to vector<8x256xf32>
    %19 = arith.maximumf %17, %18 : vector<8x256xf32>
    %20 = arith.subf %19, %10 : vector<8x256xf32>
    %21 = vector.broadcast %3 : vector<8x1xf32> to vector<8x256xf32>
    %22 = arith.mulf %21, %20 : vector<8x256xf32>
    %23 = arith.addf %10, %22 : vector<8x256xf32>
    %c0_12 = arith.constant 0 : index
    %c0_13 = arith.constant 0 : index
    %24 = vector.load %arg7[%c0_12, %c0_13] : memref<8x256xf32, #tpu.memory_space<vmem>>, vector<8x256xf32>
    tpu.vector_store %arg7[%c0_12, %c0_13], %19 {strides = array<i32>} : memref<8x256xf32, #tpu.memory_space<vmem>>, vector<8x256xf32>,
    %c0_14 = arith.constant 0 : index
    %c0_15 = arith.constant 0 : index
    %25 = vector.load %arg8[%c0_14, %c0_15] : memref<8x256xf32, #tpu.memory_space<vmem>>, vector<8x256xf32>
    tpu.vector_store %arg8[%c0_14, %c0_15], %23 {strides = array<i32>} : memref<8x256xf32, #tpu.memory_space<vmem>>, vector<8x256xf32>,
    return
  }
  func.func @transform_0(%arg0: i32, %arg1: i32) -> (i32, i32) {
    %c0_i32 = arith.constant 0 : i32
    return %arg0, %arg1 : i32, i32
  }
  func.func @transform_1(%arg0: i32, %arg1: i32) -> (i32, i32) {
    %c0_i32 = arith.constant 0 : i32
    return %arg0, %arg1 : i32, i32
  }
  func.func @transform_2(%arg0: i32, %arg1: i32) -> (i32, i32) {
    %c0_i32 = arith.constant 0 : i32
    %c0_i32_0 = arith.constant 0 : i32
    return %arg0, %c0_i32 : i32, i32
  }
  func.func @transform_3(%arg0: i32, %arg1: i32) -> (i32, i32) {
    %c0_i32 = arith.constant 0 : i32
    %c0_i32_0 = arith.constant 0 : i32
    return %arg0, %c0_i32 : i32, i32
  }
  func.func @transform_4(%arg0: i32, %arg1: i32) -> (i32, i32) {
    %c0_i32 = arith.constant 0 : i32
    %c0_i32_0 = arith.constant 0 : i32
    return %arg0, %c0_i32 : i32, i32
  }
  func.func @transform_5(%arg0: i32, %arg1: i32) -> (i32, i32) {
    %c0_i32 = arith.constant 0 : i32
    return %arg0, %arg1 : i32, i32
  }
  func.func @transform_6(%arg0: i32, %arg1: i32) -> (i32, i32) {
    %c0_i32 = arith.constant 0 : i32
    return %arg0, %arg1 : i32, i32
  }
}

</mosaic_0001>

<llo_original>
// kernel: tpu_custom_call.1
$region0: #{tpu_custom_call.1}
  #allocation0 [shape = 'u32[]', space=smem, size = 0x4, offset = 0x4, fixed_abs, tag = 'smem constant byte address 0x4 - core index']
  #allocation1 [shape = 'u32[144,128]{1,0:T(1,128)}', space=vmem, size = 0x12000, scoped, tag = 'internal scratch']
  %s0 = inlined_call_operand.vmem [shape: f32[8,256], index: 0, kind: input, shape index: {}]
  %s1 = inlined_call_operand.hbm [shape: f32[8,256], index: 1, kind: input, shape index: {}]
  %s2 = inlined_call_operand.vmem [shape: f32[8,1], index: 2, kind: input, shape index: {}]
  %s3 = inlined_call_operand.vmem [shape: f32[8,1], index: 3, kind: input, shape index: {}]
  %s4 = inlined_call_operand.vmem [shape: f32[8,1], index: 4, kind: input, shape index: {}]
  %s5 = inlined_call_operand.hbm [shape: f32[8,256], index: 5, kind: output, shape index: {0}]
  %s6 = inlined_call_operand.hbm [shape: f32[8,256], index: 6, kind: output, shape index: {1}]
  %7 = xla_tuple %s5, %s6
  %s8 = sld [smem:[#allocation0]]
  $region42: #{tpu_custom_call.1} parent=0
    _
  %s10 = ssub.s32 1, %s8
  %s11 = scalar_select 0, %s10, %s8
  $region1: #{tpu_custom_call.1} parent=0
    #allocation2 [shape = 'u8[8192]{0}', space=vmem, size = 0x2000, scoped, tag = 'input window, operand 1, single buffered']
    #allocation3 [shape = 's32[1]{0}', space=sflag, size = 0x4, scoped, tag = 'scoped memory for tpu_custom_call.1']
    #allocation4 [shape = 's32[1]{0}', space=sflag, size = 0x4, scoped, tag = 'scoped memory for tpu_custom_call.1']
    #allocation5 [shape = 'u8[8192]{0}', space=vmem, size = 0x2000, scoped, tag = 'output window, operand 0, single buffered']
    #allocation6 [shape = 'u8[8192]{0}', space=vmem, size = 0x2000, scoped, tag = 'output window, operand 1, single buffered']
    #allocation7 [shape = 's32[1]{0}', space=sflag, size = 0x4, scoped, tag = 'scoped memory for tpu_custom_call.1']
    %12 = vsyncpa [#allocation3], 0
    %13 = vsyncpa [#allocation4], 0
    %14 = vsyncpa [#allocation7], 0
    // Predicated region
    $region2: #{tpu_custom_call.1} parent=1 // pred_check
      _
    $region3: #{tpu_custom_call.1} parent=1 // pred_check_branch
      %16 = sbr.rel (0) target = $region5
    $region4: #{tpu_custom_call.1} parent=1 // pred_region
      _
    $region5: #{tpu_custom_call.1} parent=1 // pred_fallthru
      _
    // Predicated region
    $region6: #{tpu_custom_call.1} parent=1 // pred_check
      _
    $region7: #{tpu_custom_call.1} parent=1 // pred_check_branch
      %18 = sbr.rel (0) target = $region9
    $region8: #{tpu_custom_call.1} parent=1 // pred_region
      %s20 = ssub.s32 256, 256
      %21 = vsyncadd [#allocation3], %s20
      %s23 = sshll.u32 [#allocation2], 4
      %s24 = int_to_ptr.vmem [resolvable:$true] %s23
      %26 = dma.hbm_to_vmem [thread:$0]  %s1, 256, %s24, [#allocation3]
    $region9: #{tpu_custom_call.1} parent=1 // pred_fallthru
      _
    // Predicated region
    $region10: #{tpu_custom_call.1} parent=1 // pred_check
      _
    $region11: #{tpu_custom_call.1} parent=1 // pred_check_branch
      %28 = sbr.rel (0) target = $region13
    $region12: #{tpu_custom_call.1} parent=1 // pred_region
      _
    $region13: #{tpu_custom_call.1} parent=1 // pred_fallthru
      _
    // Predicated region
    $region14: #{tpu_custom_call.1} parent=1 // pred_check
      _
    $region15: #{tpu_custom_call.1} parent=1 // pred_check_branch
      %30 = sbr.rel (0) target = $region17
    $region16: #{tpu_custom_call.1} parent=1 // pred_region
      _
    $region17: #{tpu_custom_call.1} parent=1 // pred_fallthru
      _
    // Predicated region
    $region18: #{tpu_custom_call.1} parent=1 // pred_check
      _
    $region19: #{tpu_custom_call.1} parent=1 // pred_check_branch
      %32 = sbr.rel (0) target = $region21
    $region20: #{tpu_custom_call.1} parent=1 // pred_region
      _
    $region21: #{tpu_custom_call.1} parent=1 // pred_fallthru
      _
    // Predicated region
    $region22: #{tpu_custom_call.1} parent=1 // pred_check
      _
    $region23: #{tpu_custom_call.1} parent=1 // pred_check_branch
      %34 = sbr.rel (0) target = $region25
    $region24: #{tpu_custom_call.1} parent=1 // pred_region
      %35 = dma.done [#allocation3], 256
    $region25: #{tpu_custom_call.1} parent=1 // pred_fallthru
      _
    %v36 = vld [vmem:[%s0] sm:$0xff]
    %v37 = vld [vmem:[%s0 + $0x8] sm:$0xff]
    %v38 = vld [vmem:[#allocation2] sm:$0xff]
    %v39 = vld [vmem:[#allocation2 + $0x8] sm:$0xff]
    %v40 = vld [vmem:[%s2] sm:$0xff]
    %v41 = vld [vmem:[%s3] sm:$0xff]
    %v42 = vld [vmem:[%s4] sm:$0xff]
    %v43 = vmax.f32 %v36, 0.0
    %v44 = vmax.f32 %v37, 0.0
    %v45 = vmax.f32 %v38, 0.0
    %v46 = vmax.f32 %v39, 0.0
    %48 = vset.pattern.permute.xlu0 0
    %49 = vperm.xlu0 %48, %v40
    %v50 = vpop.permute.xlu0 %49
    %v52 = vmin.f32 %v50, %v45
    %v53 = vmin.f32 %v50, %v46
    %v54 = vsub.f32 %v50, %v52
    %v55 = vsub.f32 %v50, %v53
    %v56 = vadd.f32 %v54, 1e-06
    %v57 = vadd.f32 %v55, 1e-06
    %59 = vset.pattern.permute.xlu0 0
    %60 = vperm.xlu0 %59, %v42
    %v61 = vpop.permute.xlu0 %60
    %v63 = vmul.f32 %v56, %v61
    %v64 = vmul.f32 %v57, %v61
    %v65 = vmul.f32 %v43, %v63
    %v66 = vmul.f32 %v44, %v64
    %v67 = vmax.f32 %v65, 0.0
    %v68 = vmax.f32 %v66, 0.0
    %v69 = vsub.f32 %v67, %v52
    %v70 = vsub.f32 %v68, %v53
    %72 = vset.pattern.permute.xlu0 0
    %73 = vperm.xlu0 %72, %v41
    %v74 = vpop.permute.xlu0 %73
    %v76 = vmul.f32 %v74, %v69
    %v77 = vmul.f32 %v74, %v70
    %v78 = vadd.f32 %v52, %v76
    %v79 = vadd.f32 %v53, %v77
    %80 = vst [vmem:[#allocation5] sm:$0xff] %v67
    %81 = vst [vmem:[#allocation5 + $0x8] sm:$0xff] %v68
    %82 = vst [vmem:[#allocation6] sm:$0xff] %v78
    %83 = vst [vmem:[#allocation6 + $0x8] sm:$0xff] %v79
    // Predicated region
    $region26: #{tpu_custom_call.1} parent=1 // pred_check
      _
    $region27: #{tpu_custom_call.1} parent=1 // pred_check_branch
      %85 = sbr.rel (0) target = $region29
    $region28: #{tpu_custom_call.1} parent=1 // pred_region
      %s87 = ssub.s32 256, 256
      %88 = vsyncadd [#allocation4], %s87
      %s90 = sshll.u32 [#allocation5], 4
      %s91 = int_to_ptr.vmem [resolvable:$true] %s90
      %93 = dma.vmem_to_hbm [thread:$0]  %s91, 256, %s5, [#allocation4]
    $region29: #{tpu_custom_call.1} parent=1 // pred_fallthru
      _
    // Predicated region
    $region30: #{tpu_custom_call.1} parent=1 // pred_check
      _
    $region31: #{tpu_custom_call.1} parent=1 // pred_check_branch
      %95 = sbr.rel (0) target = $region33
    $region32: #{tpu_custom_call.1} parent=1 // pred_region
      %s97 = ssub.s32 256, 256
      %98 = vsyncadd [#allocation7], %s97
      %s100 = sshll.u32 [#allocation6], 4
      %s101 = int_to_ptr.vmem [resolvable:$true] %s100
      %103 = dma.vmem_to_hbm [thread:$0]  %s101, 256, %s6, [#allocation7]
    $region33: #{tpu_custom_call.1} parent=1 // pred_fallthru
      _
    // Predicated region
    $region34: #{tpu_custom_call.1} parent=1 // pred_check
      _
    $region35: #{tpu_custom_call.1} parent=1 // pred_check_branch
      %105 = sbr.rel (0) target = $region37
    $region36: #{tpu_custom_call.1} parent=1 // pred_region
      %106 = dma.done [#allocation4], 256
    $region37: #{tpu_custom_call.1} parent=1 // pred_fallthru
      _
    // Predicated region
    $region38: #{tpu_custom_call.1} parent=1 // pred_check
      _
    $region39: #{tpu_custom_call.1} parent=1 // pred_check_branch
      %108 = sbr.rel (0) target = $region41
    $region40: #{tpu_custom_call.1} parent=1 // pred_region
      %109 = dma.done [#allocation7], 256
    $region41: #{tpu_custom_call.1} parent=1 // pred_fallthru
      _
    %110 = vsyncpa [#allocation3], 1
    %111 = vsyncpa [#allocation4], 1
    %112 = vsyncpa [#allocation7], 1

</llo_original>
